<compile_context>
chip_gen: v6e
topology: v6e:2x2x1
jax: 0.10.0
libtpu: 0.0.40
codegen_flags: <defaults>
</compile_context>

<pallas_src>
from functools import partial

import jax
import jax.numpy as jnp
from jax.experimental import pallas as pl
from jax.experimental.pallas import tpu as pltpu


def _msconv_init_kernel(exc_ref, inh_ref, sel_ref, w_ref, delay_ref, ratio_ref, *, beta, tau):
    """One tile of MSConv_out_dim rows.

    exc_ref / inh_ref / w_ref : (tile_O, F) f32, F = I*T*KH*KW (PyTorch layout, flattened)
    sel_ref                   : (F, T) f32 0/1 selector; column t picks entries with tau == t
    delay_ref                 : (tile_O, T)
    ratio_ref                 : (tile_O, 1) per-row std/mean (unbiased std, torch default)
    """
    # Elementwise combine (VPU) + lane-dense store of the dominant output array.
    w = exc_ref[...] + beta * inh_ref[...]
    w_ref[...] = w

    # delay_weights = sum over (in_ch, kh, kw) per tau  ==  w @ selector  (MXU, f32 accumulate).
    delay = jnp.dot(w, sel_ref[...], preferred_element_type=jnp.float32)   # (tile_O, T)
    delay_ref[...] = delay

    # Per-row coefficient of variation.  NOTE: like the PyTorch reference, this divides by the
    # per-row mean of delay_weights, which may be ~0 for mixed-sign weights (no epsilon added
    # to preserve the original semantics).
    mean = jnp.sum(delay, axis=1, keepdims=True) * (1.0 / tau)                        # (tile_O, 1)
    var = jnp.sum((delay - mean) ** 2, axis=1, keepdims=True) * (1.0 / (tau - 1.0))   # unbiased
    inv_mean = pl.reciprocal(mean, approx=True)            # EUP approx reciprocal
    inv_mean = inv_mean * (2.0 - mean * inv_mean)          # one Newton step -> ~f32 accuracy
    ratio_ref[...] = jnp.sqrt(var) * inv_mean


def _pick_tile_o(O, F, *, bytes_per_elem=4, vmem_budget_bytes=24 << 20):
    """Largest multiple-of-8 O-tile whose pipelined working set fits the VMEM budget.

    Working set ~= (2 inputs + 1 large output) x 2 pipeline buffers x tile_O * F * 4 B.
    24 MiB leaves headroom under the v7x scoped-VMEM default (32 MiB of 64 MiB physical).
    """
    per_row = 6 * F * bytes_per_elem
    cap = max(1, vmem_budget_bytes // per_row)
    if O <= 8 or cap >= O:
        return O                                  # single block spans the whole (tiny) O axis
    return max(8, (min(cap, O) // 8) * 8)         # multiple of 8; ragged tail handled by cdiv


def msconv_train_init(weights_exc, weights_inh, beta, *, tile_o=None):
    """Pallas replacement for the tensor math in TrainMSConv.__init__.

    Args:
      weights_exc, weights_inh: (O, I, T, KH, KW) float32, PyTorch conv3d-style layout.
      beta: python float, par.MSConv_beta.
      tile_o: optional tile size along O (multiple of 8); auto-picked from a VMEM budget.

    Returns:
      weights       : (O, I, T, KH, KW) combined weights
      delay_weights : (O, T)
      STD_goal      : scalar
    """
    O, I, T, KH, KW = weights_exc.shape
    if T < 2:
        raise ValueError("MSConv_m (tau delays) must be >= 2 for the unbiased std in STD_goal")
    F = I * T * KH * KW

    # Free, contiguous reshape — no transpose, no extra HBM traffic.
    exc2 = jnp.asarray(weights_exc, jnp.float32).reshape(O, F)
    inh2 = jnp.asarray(weights_inh, jnp.float32).reshape(O, F)

    # 0/1 selector recovering per-tau sums of a row-flattened (I, T, KH, KW) block:
    #   flat index f = ((i*T + t)*KH + kh)*KW + kw  ->  tau(f) = (f // (KH*KW)) % T
    tau_of_f = (jnp.arange(F, dtype=jnp.int32) // (KH * KW)) % T
    sel = (tau_of_f[:, None] == jnp.arange(T, dtype=jnp.int32)[None, :]).astype(jnp.float32)

    if tile_o is None:
        tile_o = _pick_tile_o(O, F)
    tile_o = min(tile_o, O)

    grid = (pl.cdiv(O, tile_o),)

    w2, delay, ratio = pl.pallas_call(
        partial(_msconv_init_kernel, beta=float(beta), tau=float(T)),
        out_shape=(
            jax.ShapeDtypeStruct((O, F), jnp.float32),   # combined weights (flattened, lane-dense)
            jax.ShapeDtypeStruct((O, T), jnp.float32),   # delay_weights
            jax.ShapeDtypeStruct((O, 1), jnp.float32),   # per-row std/mean ratio
        ),
        grid_spec=pltpu.PrefetchScalarGridSpec(
            num_scalar_prefetch=0,
            grid=grid,
            in_specs=[
                pl.BlockSpec((tile_o, F), lambda i: (i, 0)),
                pl.BlockSpec((tile_o, F), lambda i: (i, 0)),
                pl.BlockSpec((F, T), lambda i: (0, 0)),       # tiny constant, replicated per tile
            ],
            out_specs=(
                pl.BlockSpec((tile_o, F), lambda i: (i, 0)),
                pl.BlockSpec((tile_o, T), lambda i: (i, 0)),
                pl.BlockSpec((tile_o, 1), lambda i: (i, 0)),
            ),
        ),
        compiler_params=pltpu.CompilerParams(
            dimension_semantics=("parallel",),
        ),
    )(exc2, inh2, sel)

    weights = w2.reshape(O, I, T, KH, KW)     # free view back to the PyTorch layout
    std_goal = jnp.mean(ratio[:, 0])          # finish the tiny scalar mean in the wrapper
    return weights, delay, std_goal


if __name__ == "__main__":
    # Small, deterministic synthetic MSConv weights:
    #   O = MSConv_out_dim = 16, I = merge_out_dim = 1, T = MSConv_m = 10, kernel = 5x5
    key = jax.random.PRNGKey(0)
    k_exc, k_inh = jax.random.split(key)
    O, I, T, KH, KW = 16, 1, 10, 5, 5
    beta = 0.5  # par.MSConv_beta

    w_exc = jax.random.uniform(k_exc, (O, I, T, KH, KW), jnp.float32, minval=0.5, maxval=1.0)
    w_inh = jax.random.uniform(k_inh, (O, I, T, KH, KW), jnp.float32, minval=-0.2, maxval=0.0)

    # tile_o=8 -> grid of 2 exercises the multi-tile 'parallel' path even at this tiny size.
    weights, delay_weights, std_goal = msconv_train_init(w_exc, w_inh, beta, tile_o=8)
    jax.block_until_ready((weights, delay_weights, std_goal))

    # Plain-JAX reference with the same semantics as the PyTorch module.
    w_ref = w_exc + beta * w_inh
    delay_ref = jnp.sum(w_ref, axis=(1, 3, 4))
    std_ref = jnp.mean(jnp.std(delay_ref, axis=1, ddof=1) / jnp.mean(delay_ref, axis=1))

    assert jnp.allclose(weights, w_ref, atol=1e-5, rtol=1e-5)
    assert jnp.allclose(delay_weights, delay_ref, atol=1e-4, rtol=1e-4)
    assert jnp.allclose(std_goal, std_ref, atol=1e-4, rtol=1e-4)

    print("KERNEL_OK")
</pallas_src>

<mosaic_0001>
module attributes {stable_mosaic.version = 11 : i64} {
  func.func @_msconv_init_kernel(%arg0: i32, %arg1: memref<8x250xf32, #tpu.memory_space<vmem>>, %arg2: memref<8x250xf32, #tpu.memory_space<vmem>>, %arg3: memref<250x10xf32, #tpu.memory_space<vmem>>, %arg4: memref<8x250xf32, #tpu.memory_space<vmem>>, %arg5: memref<8x10xf32, #tpu.memory_space<vmem>>, %arg6: memref<8x1xf32, #tpu.memory_space<vmem>>) attributes {dimension_semantics = [#tpu.dimension_semantics<parallel>], iteration_bounds = array<i64: 2>, scalar_prefetch = 0 : i64, scratch_operands = 0 : i64, tpu.core_type = #tpu.core_type<tc>, window_params = [{transform_indices = @transform_0, window_bounds = array<i64: 8, 250>}, {transform_indices = @transform_1, window_bounds = array<i64: 8, 250>}, {pipeline_mode = #tpu.pipeline_mode<synchronous>, transform_indices = @transform_2, window_bounds = array<i64: 250, 10>}, {transform_indices = @transform_3, window_bounds = array<i64: 8, 250>}, {transform_indices = @transform_4, window_bounds = array<i64: 8, 10>}, {transform_indices = @transform_5, window_bounds = array<i64: 8, 1>}]} {
    %c0 = arith.constant 0 : index
    %c0_0 = arith.constant 0 : index
    %0 = vector.load %arg1[%c0, %c0_0] : memref<8x250xf32, #tpu.memory_space<vmem>>, vector<8x250xf32>
    %c0_1 = arith.constant 0 : index
    %c0_2 = arith.constant 0 : index
    %1 = vector.load %arg2[%c0_1, %c0_2] : memref<8x250xf32, #tpu.memory_space<vmem>>, vector<8x250xf32>
    %cst = arith.constant 5.000000e-01 : f32
    %2 = vector.broadcast %cst : f32 to vector<8x250xf32>
    %3 = arith.mulf %2, %1 : vector<8x250xf32>
    %4 = arith.addf %0, %3 : vector<8x250xf32>
    %c0_3 = arith.constant 0 : index
    %c0_4 = arith.constant 0 : index
    %5 = vector.load %arg4[%c0_3, %c0_4] : memref<8x250xf32, #tpu.memory_space<vmem>>, vector<8x250xf32>
    tpu.vector_store %arg4[%c0_3, %c0_4], %4 {strides = array<i32>} : memref<8x250xf32, #tpu.memory_space<vmem>>, vector<8x250xf32>,
    %c0_5 = arith.constant 0 : index
    %c0_6 = arith.constant 0 : index
    %6 = vector.load %arg3[%c0_5, %c0_6] : memref<250x10xf32, #tpu.memory_space<vmem>>, vector<250x10xf32>
    %cst_7 = arith.constant dense<0.000000e+00> : vector<8x10xf32>
    %7 = tpu.matmul %4, %6, %cst_7 {dimension_numbers = #tpu.dot_dimension_numbers<[1], [0], [0], [1], [0, 0, 1, 1], [], []>} : vector<8x250xf32>, vector<250x10xf32>, vector<8x10xf32> -> vector<8x10xf32>
    %c0_8 = arith.constant 0 : index
    %c0_9 = arith.constant 0 : index
    %8 = vector.load %arg5[%c0_8, %c0_9] : memref<8x10xf32, #tpu.memory_space<vmem>>, vector<8x10xf32>
    tpu.vector_store %arg5[%c0_8, %c0_9], %7 {strides = array<i32>} : memref<8x10xf32, #tpu.memory_space<vmem>>, vector<8x10xf32>,
    %cst_10 = arith.constant dense<0.000000e+00> : vector<8xf32>
    %9 = vector.multi_reduction <add>, %7, %cst_10 [1] : vector<8x10xf32> to vector<8xf32>
    %10 = vector.shape_cast %9 : vector<8xf32> to vector<8x1xf32>
    %cst_11 = arith.constant 1.000000e-01 : f32
    %11 = vector.broadcast %cst_11 : f32 to vector<8x1xf32>
    %12 = arith.mulf %10, %11 : vector<8x1xf32>
    %13 = vector.broadcast %12 : vector<8x1xf32> to vector<8x10xf32>
    %14 = arith.subf %7, %13 : vector<8x10xf32>
    %15 = arith.mulf %14, %14 : vector<8x10xf32>
    %cst_12 = arith.constant dense<0.000000e+00> : vector<8xf32>
    %16 = vector.multi_reduction <add>, %15, %cst_12 [1] : vector<8x10xf32> to vector<8xf32>
    %17 = vector.shape_cast %16 : vector<8xf32> to vector<8x1xf32>
    %cst_13 = arith.constant 0.111111112 : f32
    %18 = vector.broadcast %cst_13 : f32 to vector<8x1xf32>
    %19 = arith.mulf %17, %18 : vector<8x1xf32>
    %20 = tpu.reciprocal %12 {approx = true} : vector<8x1xf32> -> vector<8x1xf32>
    %21 = arith.mulf %12, %20 : vector<8x1xf32>
    %cst_14 = arith.constant 2.000000e+00 : f32
    %22 = vector.broadcast %cst_14 : f32 to vector<8x1xf32>
    %23 = arith.subf %22, %21 : vector<8x1xf32>
    %24 = arith.mulf %20, %23 : vector<8x1xf32>
    %25 = math.sqrt %19 : vector<8x1xf32>
    %26 = arith.mulf %25, %24 : vector<8x1xf32>
    %c0_15 = arith.constant 0 : index
    %c0_16 = arith.constant 0 : index
    %27 = vector.load %arg6[%c0_15, %c0_16] : memref<8x1xf32, #tpu.memory_space<vmem>>, vector<8x1xf32>
    tpu.vector_store %arg6[%c0_15, %c0_16], %26 {strides = array<i32>} : memref<8x1xf32, #tpu.memory_space<vmem>>, vector<8x1xf32>,
    return
  }
  func.func @transform_0(%arg0: i32) -> (i32, i32) {
    %c0_i32 = arith.constant 0 : i32
    %c0_i32_0 = arith.constant 0 : i32
    return %arg0, %c0_i32 : i32, i32
  }
  func.func @transform_1(%arg0: i32) -> (i32, i32) {
    %c0_i32 = arith.constant 0 : i32
    %c0_i32_0 = arith.constant 0 : i32
    return %arg0, %c0_i32 : i32, i32
  }
  func.func @transform_2(%arg0: i32) -> (i32, i32) {
    %c0_i32 = arith.constant 0 : i32
    %c0_i32_0 = arith.constant 0 : i32
    %c0_i32_1 = arith.constant 0 : i32
    return %c0_i32, %c0_i32_0 : i32, i32
  }
  func.func @transform_3(%arg0: i32) -> (i32, i32) {
    %c0_i32 = arith.constant 0 : i32
    %c0_i32_0 = arith.constant 0 : i32
    return %arg0, %c0_i32 : i32, i32
  }
  func.func @transform_4(%arg0: i32) -> (i32, i32) {
    %c0_i32 = arith.constant 0 : i32
    %c0_i32_0 = arith.constant 0 : i32
    return %arg0, %c0_i32 : i32, i32
  }
  func.func @transform_5(%arg0: i32) -> (i32, i32) {
    %c0_i32 = arith.constant 0 : i32
    %c0_i32_0 = arith.constant 0 : i32
    return %arg0, %c0_i32 : i32, i32
  }
}

</mosaic_0001>

<llo_original>
// kernel: tpu_custom_call.1
$region0: #{tpu_custom_call.1}
  #allocation0 [shape = 'u32[]', space=smem, size = 0x4, offset = 0x4, fixed_abs, tag = 'smem constant byte address 0x4 - core index']
  #allocation1 [shape = 'u32[144,128]{1,0:T(1,128)}', space=vmem, size = 0x12000, scoped, tag = 'internal scratch']
  %s0 = inlined_call_operand.vmem [shape: f32[16,250], index: 0, kind: input, shape index: {}]
  %s1 = inlined_call_operand.vmem [shape: f32[16,250], index: 1, kind: input, shape index: {}]
  %s2 = inlined_call_operand.vmem [shape: f32[250,10], index: 2, kind: input, shape index: {}]
  %s3 = inlined_call_operand.hbm [shape: f32[16,250], index: 3, kind: output, shape index: {0}]
  %s4 = inlined_call_operand.hbm [shape: f32[16,10], index: 4, kind: output, shape index: {1}]
  %s5 = inlined_call_operand.vmem [shape: f32[16,1], index: 5, kind: output, shape index: {2}]
  %6 = xla_tuple %s3, %s4, %s5
  %s7 = sld [smem:[#allocation0]]
  $region61: #{tpu_custom_call.1} parent=0
    _
  %s9 = ssub.s32 1, %s7
  %s10 = scalar_select 0, %s9, %s7
  $region1: #{tpu_custom_call.1} parent=0
    #allocation2 [shape = 'u8[16384]{0}', space=vmem, size = 0x4000, scoped, tag = 'output window, operand 0']
    #allocation3 [shape = 's32[2]{0}', space=sflag, size = 0x8, scoped, tag = 'scoped memory for tpu_custom_call.1']
    #allocation4 [shape = 'u8[8192]{0}', space=vmem, size = 0x2000, scoped, tag = 'output window, operand 1']
    #allocation5 [shape = 's32[2]{0}', space=sflag, size = 0x8, scoped, tag = 'scoped memory for tpu_custom_call.1']
    %11 = vsyncpa [#allocation3], 0
    %s12 = scalar_lea.sflag [#allocation3], 1
    %13 = vsyncpa %s12, 0
    %14 = vsyncpa [#allocation5], 0
    %s15 = scalar_lea.sflag [#allocation5], 1
    %16 = vsyncpa %s15, 0
    loop: start=0, step=1, limit=4
    $region2: #{tpu_custom_call.1} parent=1 // loop_pre_header
      _
    $region3: #{tpu_custom_call.1} parent=1 // loop_header
      %s18 = sphi 0, %s22
      %p19 = scmp.ge.s32.totalorder %s18, 4
      %s28 = sphi 0, %s30
      %s31 = sphi 0, %s28
      %s32 = sphi 0, %s31
      %s48 = sphi 0, %s32
      %s54 = sphi 0, %s56
      %s57 = sphi 0, %s54
      %s58 = sphi 0, %s57
      %s74 = sphi 0, %s58
      %s78 = sphi 0, %s78
      %s80 = sphi 0, %s78
      %s81 = sphi 0, %s80
      %s95 = sphi 0, %s81
      %s101 = sphi 0, %s103
      %s104 = sphi 0, %s101
      %s105 = sphi 0, %s104
      %s121 = sphi 0, %s105
      %s127 = sphi 0, %s129
      %s130 = sphi 0, %s127
      %s131 = sphi 0, %s130
      %s147 = sphi 0, %s131
      %s153 = sphi 0, %s155
      %s156 = sphi 0, %s153
      %s157 = sphi 0, %s156
      %s173 = sphi 0, %s157
    $region4: #{tpu_custom_call.1} parent=1 // loop_header_branch
      %21 = sbr.rel (%p19) target = $region8
    $region5: #{tpu_custom_call.1} parent=1 // loop_body
      %s23 = ssub.s32 %s18, 1
      %s24 = ssub.s32 %s18, 2
      %s25 = sadd.s32 %s18, 1
      %s26 = ssub.s32 %s18, %s25
      %p27 = scmp.eq.s32.totalorder %s26, 0
      %s29 = sadd.s32 %s28, 1
      %s30 = scalar_select %p27, %s28, %s29
      %p33 = pneg %p27
      %p34 = scmp.eq.s32.totalorder %s18, 1
      %p35 = por %p33, %p34
      %p36 = scmp.ne.s32.totalorder %s28, %s31
      %p37 = scmp.eq.s32.totalorder %s18, 0
      %p38 = por %p36, %p37
      %p39 = scmp.ne.s32.totalorder %s28, %s31
      %p40 = scmp.eq.s32.totalorder %s23, 1
      %p41 = por %p39, %p40
      %p42 = scmp.ne.s32.totalorder %s31, %s32
      %p43 = scmp.eq.s32.totalorder %s23, 0
      %p44 = por %p42, %p43
      %p45 = scmp.ne.s32.totalorder %s31, %s32
      %p46 = scmp.eq.s32.totalorder %s24, 1
      %p47 = por %p45, %p46
      %p49 = scmp.ne.s32.totalorder %s32, %s48
      %p50 = scmp.eq.s32.totalorder %s24, 0
      %p51 = por %p49, %p50
      %s52 = ssub.s32 %s18, %s25
      %p53 = scmp.eq.s32.totalorder %s52, 0
      %s55 = sadd.s32 %s54, 1
      %s56 = scalar_select %p53, %s54, %s55
      %p59 = pneg %p53
      %p60 = scmp.eq.s32.totalorder %s18, 1
      %p61 = por %p59, %p60
      %p62 = scmp.ne.s32.totalorder %s54, %s57
      %p63 = scmp.eq.s32.totalorder %s18, 0
      %p64 = por %p62, %p63
      %p65 = scmp.ne.s32.totalorder %s54, %s57
      %p66 = scmp.eq.s32.totalorder %s23, 1
      %p67 = por %p65, %p66
      %p68 = scmp.ne.s32.totalorder %s57, %s58
      %p69 = scmp.eq.s32.totalorder %s23, 0
      %p70 = por %p68, %p69
      %p71 = scmp.ne.s32.totalorder %s57, %s58
      %p72 = scmp.eq.s32.totalorder %s24, 1
      %p73 = por %p71, %p72
      %p75 = scmp.ne.s32.totalorder %s58, %s74
      %p76 = scmp.eq.s32.totalorder %s24, 0
      %p77 = por %p75, %p76
      %s79 = sadd.s32 %s78, 1
      %p82 = scmp.eq.s32.totalorder %s18, 1
      %p83 = scmp.ne.s32.totalorder %s78, %s80
      %p84 = scmp.eq.s32.totalorder %s18, 0
      %p85 = por %p83, %p84
      %p86 = scmp.ne.s32.totalorder %s78, %s80
      %p87 = scmp.eq.s32.totalorder %s23, 1
      %p88 = por %p86, %p87
      %p89 = scmp.ne.s32.totalorder %s80, %s81
      %p90 = scmp.eq.s32.totalorder %s23, 0
      %p91 = por %p89, %p90
      %p92 = scmp.ne.s32.totalorder %s80, %s81
      %p93 = scmp.eq.s32.totalorder %s24, 1
      %p94 = por %p92, %p93
      %p96 = scmp.ne.s32.totalorder %s81, %s95
      %p97 = scmp.eq.s32.totalorder %s24, 0
      %p98 = por %p96, %p97
      %s99 = ssub.s32 %s18, %s25
      %p100 = scmp.eq.s32.totalorder %s99, 0
      %s102 = sadd.s32 %s101, 1
      %s103 = scalar_select %p100, %s101, %s102
      %p106 = pneg %p100
      %p107 = scmp.eq.s32.totalorder %s18, 1
      %p108 = por %p106, %p107
      %p109 = scmp.ne.s32.totalorder %s101, %s104
      %p110 = scmp.eq.s32.totalorder %s18, 0
      %p111 = por %p109, %p110
      %p112 = scmp.ne.s32.totalorder %s101, %s104
      %p113 = scmp.eq.s32.totalorder %s23, 1
      %p114 = por %p112, %p113
      %p115 = scmp.ne.s32.totalorder %s104, %s105
      %p116 = scmp.eq.s32.totalorder %s23, 0
      %p117 = por %p115, %p116
      %p118 = scmp.ne.s32.totalorder %s104, %s105
      %p119 = scmp.eq.s32.totalorder %s24, 1
      %p120 = por %p118, %p119
      %p122 = scmp.ne.s32.totalorder %s105, %s121
      %p123 = scmp.eq.s32.totalorder %s24, 0
      %p124 = por %p122, %p123
      %s125 = ssub.s32 %s18, %s25
      %p126 = scmp.eq.s32.totalorder %s125, 0
      %s128 = sadd.s32 %s127, 1
      %s129 = scalar_select %p126, %s127, %s128
      %p132 = pneg %p126
      %p133 = scmp.eq.s32.totalorder %s18, 1
      %p134 = por %p132, %p133
      %p135 = scmp.ne.s32.totalorder %s127, %s130
      %p136 = scmp.eq.s32.totalorder %s18, 0
      %p137 = por %p135, %p136
      %p138 = scmp.ne.s32.totalorder %s127, %s130
      %p139 = scmp.eq.s32.totalorder %s23, 1
      %p140 = por %p138, %p139
      %p141 = scmp.ne.s32.totalorder %s130, %s131
      %p142 = scmp.eq.s32.totalorder %s23, 0
      %p143 = por %p141, %p142
      %p144 = scmp.ne.s32.totalorder %s130, %s131
      %p145 = scmp.eq.s32.totalorder %s24, 1
      %p146 = por %p144, %p145
      %p148 = scmp.ne.s32.totalorder %s131, %s147
      %p149 = scmp.eq.s32.totalorder %s24, 0
      %p150 = por %p148, %p149
      %s151 = ssub.s32 %s18, %s25
      %p152 = scmp.eq.s32.totalorder %s151, 0
      %s154 = sadd.s32 %s153, 1
      %s155 = scalar_select %p152, %s153, %s154
      %p158 = pneg %p152
      %p159 = scmp.eq.s32.totalorder %s18, 1
      %p160 = por %p158, %p159
      %p161 = scmp.ne.s32.totalorder %s153, %s156
      %p162 = scmp.eq.s32.totalorder %s18, 0
      %p163 = por %p161, %p162
      %p164 = scmp.ne.s32.totalorder %s153, %s156
      %p165 = scmp.eq.s32.totalorder %s23, 1
      %p166 = por %p164, %p165
      %p167 = scmp.ne.s32.totalorder %s156, %s157
      %p168 = scmp.eq.s32.totalorder %s23, 0
      %p169 = por %p167, %p168
      %p170 = scmp.ne.s32.totalorder %s156, %s157
      %p171 = scmp.eq.s32.totalorder %s24, 1
      %p172 = por %p170, %p171
      %p174 = scmp.ne.s32.totalorder %s157, %s173
      %p175 = scmp.eq.s32.totalorder %s24, 0
      %p176 = por %p174, %p175
      %p177 = scmp.le.s32.totalorder 1, %s18
      %p178 = scmp.lt.s32.totalorder %s18, 3
      %p179 = pnand %p177, %p178
      %p180 = pneg %p179
      // Predicated region
      $region9: #{tpu_custom_call.1} parent=5 // pred_check
        _
      $region10: #{tpu_custom_call.1} parent=5 // pred_check_branch
        %182 = sbr.rel (%p179) target = $region12
      $region11: #{tpu_custom_call.1} parent=5 // pred_region
        %s183 = ssub.s32 %s18, 1
        // Predicated region
        $region13: #{tpu_custom_call.1} parent=11 // pred_check
          %p184 = pneg %p91
        $region14: #{tpu_custom_call.1} parent=11 // pred_check_branch
          %186 = sbr.rel (%p184) target = $region16
        $region15: #{tpu_custom_call.1} parent=11 // pred_region
          _
        $region16: #{tpu_custom_call.1} parent=11 // pred_fallthru
          _
      $region12: #{tpu_custom_call.1} parent=5 // pred_fallthru
        _
      %p187 = scmp.lt.s32.totalorder %s18, 2
      // Predicated region
      $region17: #{tpu_custom_call.1} parent=5 // pred_check
        %p188 = pneg %p187
      $region18: #{tpu_custom_call.1} parent=5 // pred_check_branch
        %190 = sbr.rel (%p188) target = $region20
      $region19: #{tpu_custom_call.1} parent=5 // pred_region
        // Predicated region
        $region21: #{tpu_custom_call.1} parent=19 // pred_check
          %p191 = pneg %p38
        $region22: #{tpu_custom_call.1} parent=19 // pred_check_branch
          %193 = sbr.rel (%p191) target = $region24
        $region23: #{tpu_custom_call.1} parent=19 // pred_region
          %p194 = scmp.lt.s32.totalorder %s18, 1
          %s195 = scalar_select %p194, %s18, 1
          %s196 = smul.addr %s195, 2
          %s197 = smul.addr %s196, 8
          %s198 = scalar_lea.vmem %s0, %s197
        $region24: #{tpu_custom_call.1} parent=19 // pred_fallthru
          _
        // Predicated region
        $region25: #{tpu_custom_call.1} parent=19 // pred_check
          %p199 = pneg %p64
        $region26: #{tpu_custom_call.1} parent=19 // pred_check_branch
          %201 = sbr.rel (%p199) target = $region28
        $region27: #{tpu_custom_call.1} parent=19 // pred_region
          %p202 = scmp.lt.s32.totalorder %s18, 1
          %s203 = scalar_select %p202, %s18, 1
          %s204 = smul.addr %s203, 2
          %s205 = smul.addr %s204, 8
          %s206 = scalar_lea.vmem %s1, %s205
        $region28: #{tpu_custom_call.1} parent=19 // pred_fallthru
          _
      $region20: #{tpu_custom_call.1} parent=5 // pred_fallthru
        _
      %p207 = scmp.le.s32.totalorder 1, %s18
      %p208 = scmp.lt.s32.totalorder %s18, 3
      %p209 = pnand %p207, %p208
      %p210 = pneg %p209
      // Predicated region
      $region29: #{tpu_custom_call.1} parent=5 // pred_check
        _
      $region30: #{tpu_custom_call.1} parent=5 // pred_check_branch
        %212 = sbr.rel (%p209) target = $region32
      $region31: #{tpu_custom_call.1} parent=5 // pred_region
        %s213 = ssub.s32 %s18, 1
        %p214 = scmp.lt.s32.totalorder %s23, 1
        %s215 = scalar_select %p214, %s23, 1
        %s216 = smul.addr %s215, 2
        %s217 = smul.addr %s216, 8
        %s218 = scalar_lea.vmem %s0, %s217
        %p219 = pneg %p44
        %p220 = pneg %p41
        %p221 = scmp.lt.s32.totalorder %s23, 1
        %s222 = scalar_select %p221, %s23, 1
        %s223 = smul.addr %s222, 2
        %s224 = smul.addr %s223, 8
        %s225 = scalar_lea.vmem %s1, %s224
        %p226 = pneg %p70
        %p227 = pneg %p67
        %p228 = pneg %p91
        %p229 = pneg %p88
        %p230 = pneg %p117
        %p231 = pneg %p114
        %s232 = sand.u32 %s104, 1
        %s233 = scalar_lea.sflag [#allocation3], %s232
        %s234 = sand.u32 %s104, 1
        %s235 = smul.addr %s234, 16
        %s236 = scalar_lea.vmem [#allocation2], %s235
        %p237 = pneg %p143
        %p238 = pneg %p140
        %s239 = sand.u32 %s130, 1
        %s240 = scalar_lea.sflag [#allocation5], %s239
        %s241 = sand.u32 %s130, 1
        %s242 = smul.addr %s241, 8
        %s243 = scalar_lea.vmem [#allocation4], %s242
        %p244 = pneg %p169
        %p245 = pneg %p166
        %p246 = scmp.lt.s32.totalorder %s23, 1
        %s247 = scalar_select %p246, %s23, 1
        %s248 = smul.addr %s247, 8
        %s249 = scalar_lea.vmem %s5, %s248
        %p250 = scmp.lt.s32.totalorder %s23, 1
        %s251 = scalar_select %p250, %s23, 1
        %s252 = smul.addr %s251, 2
        %s253 = smul.addr %s252, 8
        %s254 = scalar_lea.vmem %s0, %s253
        %p255 = scmp.lt.s32.totalorder %s23, 1
        %s256 = scalar_select %p255, %s23, 1
        %s257 = smul.addr %s256, 2
        %s258 = smul.addr %s257, 8
        %s259 = scalar_lea.vmem %s1, %s258
        %p260 = scmp.lt.s32.totalorder %s23, 1
        %s261 = scalar_select %p260, %s23, 1
        %s262 = smul.addr %s261, 8
        %s263 = scalar_lea.vmem %s5, %s262
        %v264 = vld [vmem:[%s254] sm:$0xff]
        %v265 = vld [vmem:[%s254 + $0x8] sm:$0xff]
        %v266 = vld [vmem:[%s259] sm:$0xff]
        %v267 = vld [vmem:[%s259 + $0x8] sm:$0xff]
        %v268 = vmul.f32 %v266, 0.5
        %v269 = vmul.f32 %v267, 0.5
        %v270 = vadd.f32 %v264, %v268
        %v271 = vadd.f32 %v265, %v269
        %272 = vst [vmem:[%s236] sm:$0xff] %v270
        %vm273 = vcmask 998400
        %274 = vst.msk [vmem:[%s236 + $0x8] sm:$0xff] %vm273, %v271
        %v275 = vld [vmem:[%s2] sm:$0xff]
        %v276 = vld [vmem:[%s2 + $0x8] sm:$0xff]
        %v277 = vld [vmem:[%s2 + $0x10] sm:$0xff]
        %v278 = vld [vmem:[%s2 + $0x18] sm:$0xff]
        %v279 = vld [vmem:[%s2 + $0x20] sm:$0xff]
        %v280 = vld [vmem:[%s2 + $0x28] sm:$0xff]
        %v281 = vld [vmem:[%s2 + $0x30] sm:$0xff]
        %v282 = vld [vmem:[%s2 + $0x38] sm:$0xff]
        %v283 = vld [vmem:[%s2 + $0x40] sm:$0xff]
        %v284 = vld [vmem:[%s2 + $0x48] sm:$0xff]
        %v285 = vld [vmem:[%s2 + $0x50] sm:$0xff]
        %v286 = vld [vmem:[%s2 + $0x58] sm:$0xff]
        %v287 = vld [vmem:[%s2 + $0x60] sm:$0xff]
        %v288 = vld [vmem:[%s2 + $0x68] sm:$0xff]
        %v289 = vld [vmem:[%s2 + $0x70] sm:$0xff]
        %v290 = vld [vmem:[%s2 + $0x78] sm:$0xff]
        %v291 = vld [vmem:[%s2 + $0x80] sm:$0xff]
        %v292 = vld [vmem:[%s2 + $0x88] sm:$0xff]
        %v293 = vld [vmem:[%s2 + $0x90] sm:$0xff]
        %v294 = vld [vmem:[%s2 + $0x98] sm:$0xff]
        %v295 = vld [vmem:[%s2 + $0xa0] sm:$0xff]
        %v296 = vld [vmem:[%s2 + $0xa8] sm:$0xff]
        %v297 = vld [vmem:[%s2 + $0xb0] sm:$0xff]
        %v298 = vld [vmem:[%s2 + $0xb8] sm:$0xff]
        %v299 = vld [vmem:[%s2 + $0xc0] sm:$0xff]
        %v300 = vld [vmem:[%s2 + $0xc8] sm:$0xff]
        %v301 = vld [vmem:[%s2 + $0xd0] sm:$0xff]
        %v302 = vld [vmem:[%s2 + $0xd8] sm:$0xff]
        %v303 = vld [vmem:[%s2 + $0xe0] sm:$0xff]
        %v304 = vld [vmem:[%s2 + $0xe8] sm:$0xff]
        %v305 = vld [vmem:[%s2 + $0xf0] sm:$0xff]
        %v306 = vld [vmem:[%s2 + $0xf8] sm:$0x3]
        %v308 = vsel %vm273, %v271, 0
        %vm310 = vcmask 1041408
        %v312 = vsel %vm310, %v306, 0
        %314 = vmatprep.subr.mxu0 0.0
        %315 = vmatpush1.msra.mxu0 %v290
        %316 = vmatprep.subr.mxu0 0.0
        %317 = vmatpush1.msra.mxu0 %v289
        %318 = vmatprep.subr.mxu0 0.0
        %319 = vmatpush1.msra.mxu0 %v288
        %320 = vmatprep.subr.mxu0 0.0
        %321 = vmatpush1.msra.mxu0 %v287
        %322 = vmatprep.subr.mxu0 0.0
        %323 = vmatpush1.msra.mxu0 %v286
        %324 = vmatprep.subr.mxu0 0.0
        %325 = vmatpush1.msra.mxu0 %v285
        %326 = vmatprep.subr.mxu0 0.0
        %327 = vmatpush1.msra.mxu0 %v284
        %328 = vmatprep.subr.mxu0 0.0
        %329 = vmatpush1.msra.mxu0 %v283
        %330 = vmatprep.subr.mxu0 0.0
        %331 = vmatpush1.msra.mxu0 %v282
        %332 = vmatprep.subr.mxu0 0.0
        %333 = vmatpush1.msra.mxu0 %v281
        %334 = vmatprep.subr.mxu0 0.0
        %335 = vmatpush1.msra.mxu0 %v280
        %336 = vmatprep.subr.mxu0 0.0
        %337 = vmatpush1.msra.mxu0 %v279
        %338 = vmatprep.subr.mxu0 0.0
        %339 = vmatpush1.msra.mxu0 %v278
        %340 = vmatprep.subr.mxu0 0.0
        %341 = vmatpush1.msra.mxu0 %v277
        %342 = vmatprep.subr.mxu0 0.0
        %343 = vmatpush1.msra.mxu0 %v276
        %344 = vmatprep.subr.mxu0 0.0
        %345 = vmatpush1.msra.mxu0 %v275
        %346 = vmatprep.subr.mxu0 0.0
        %347 = vmatpush2.msra.mxu0 %v312
        %348 = vmatprep.subr.mxu0 0.0
        %349 = vmatpush2.msra.mxu0 %v305
        %350 = vmatprep.subr.mxu0 0.0
        %351 = vmatpush2.msra.mxu0 %v304
        %352 = vmatprep.subr.mxu0 0.0
        %353 = vmatpush2.msra.mxu0 %v303
        %354 = vmatprep.subr.mxu0 0.0
        %355 = vmatpush2.msra.mxu0 %v302
        %356 = vmatprep.subr.mxu0 0.0
        %357 = vmatpush2.msra.mxu0 %v301
        %358 = vmatprep.subr.mxu0 0.0
        %359 = vmatpush2.msra.mxu0 %v300
        %360 = vmatprep.subr.mxu0 0.0
        %361 = vmatpush2.msra.mxu0 %v299
        %362 = vmatprep.subr.mxu0 0.0
        %363 = vmatpush2.msra.mxu0 %v298
        %364 = vmatprep.subr.mxu0 0.0
        %365 = vmatpush2.msra.mxu0 %v297
        %366 = vmatprep.subr.mxu0 0.0
        %367 = vmatpush2.msra.mxu0 %v296
        %368 = vmatprep.subr.mxu0 0.0
        %369 = vmatpush2.msra.mxu0 %v295
        %370 = vmatprep.subr.mxu0 0.0
        %371 = vmatpush2.msra.mxu0 %v294
        %372 = vmatprep.subr.mxu0 0.0
        %373 = vmatpush2.msra.mxu0 %v293
        %374 = vmatprep.subr.mxu0 0.0
        %375 = vmatpush2.msra.mxu0 %v292
        %376 = vmatprep.subr.mxu0 0.0
        %377 = vmatpush2.msra.mxu0 %v291
        %378 = vmatprep.mubr.f32.mxu0 %v308
        %379 = vmatmul.mubr.f32.gmra.mxu0 %v270
        %v380 = vpop.f32.mrf.mxu0
        %v381 = vadd.f32 0.0, %v380
        %v382 = vpop.f32.mrf.mxu0
        %383 = vdwg.mxu0
        %vm384 = vcmask 80896
        %385 = vst.msk [vmem:[%s243] sm:$0xff] %vm384, %v381
        %v386 = vsel %vm384, %v381, 0.0
        %387 = vadd.xlane.f32.xlu0 %v386
        %v388 = vpop.xlane.xlu0 %387
        %v389 = vmul.f32 %v388, 0.1
        %v390 = vsub.f32 %v381, %v389
        %v391 = vmul.f32 %v390, %v390
        %v392 = vsel %vm384, %v391, 0.0
        %393 = vadd.xlane.f32.xlu0 %v392
        %v394 = vpop.xlane.xlu0 %393
        %v395 = vmul.f32 %v394, 0.11111111
        %v396 = vrcp.pop %v389
        %v397 = vmul.f32 %v389, %v396
        %v398 = vsub.f32 2.0, %v397
        %v399 = vmul.f32 %v396, %v398
        %v400 = vrsqrt.pop %v395
        %v401 = vmul.f32 %v395, %v400
        %vm402 = vcmp.eq.f32.partialorder %v395, inf
        %v403 = vsel %vm402, %v395, %v401
        %vm404 = vcmp.eq.f32.partialorder %v395, 0.0
        %v405 = vand.u32 %v395, 2147483648
        %v406 = vsel %vm404, %v405, %v403
        %v407 = vmul.f32 %v406, %v399
        %vm408 = vcmask 7168
        %409 = vst.msk [vmem:[%s263] sm:$0xff] %vm408, %v407
        %s410 = sand.u32 %s104, 1
        %s411 = scalar_lea.sflag [#allocation3], %s410
        %s412 = sand.u32 %s104, 1
        %s413 = smul.addr %s412, 16
        %s414 = scalar_lea.vmem [#allocation2], %s413
        %s415 = sand.u32 %s130, 1
        %s416 = scalar_lea.sflag [#allocation5], %s415
        %s417 = sand.u32 %s130, 1
        %s418 = smul.addr %s417, 8
        %s419 = scalar_lea.vmem [#allocation4], %s418
        %p420 = scmp.lt.s32.totalorder %s23, 1
        %s421 = scalar_select %p420, %s23, 1
        %s422 = smul.addr %s421, 8
        %s423 = scalar_lea.vmem %s5, %s422
        // Predicated region
        $region33: #{tpu_custom_call.1} parent=31 // pred_check
          %p424 = pneg %p114
        $region34: #{tpu_custom_call.1} parent=31 // pred_check_branch
          %426 = sbr.rel (%p424) target = $region36
        $region35: #{tpu_custom_call.1} parent=31 // pred_region
          %s428 = ssub.s32 256, 256
          %429 = vsyncadd %s411, %s428
          %s430 = smul.addr %s23, 2
          %s431 = smul.addr %s430, 128
          %s432 = scalar_lea.hbm %s3, %s431
          %s434 = sshll.u32 %s414, 4
          %s435 = int_to_ptr.vmem [resolvable:$true] %s434
          %437 = dma.vmem_to_hbm [thread:$0]  %s435, 256, %s432, %s411
        $region36: #{tpu_custom_call.1} parent=31 // pred_fallthru
          _
        // Predicated region
        $region37: #{tpu_custom_call.1} parent=31 // pred_check
          %p438 = pneg %p140
        $region38: #{tpu_custom_call.1} parent=31 // pred_check_branch
          %440 = sbr.rel (%p438) target = $region40
        $region39: #{tpu_custom_call.1} parent=31 // pred_region
          %s442 = ssub.s32 128, 128
          %443 = vsyncadd %s416, %s442
          %s444 = smul.addr %s23, 128
          %s445 = scalar_lea.hbm %s4, %s444
          %s447 = sshll.u32 %s419, 4
          %s448 = int_to_ptr.vmem [resolvable:$true] %s447
          %450 = dma.vmem_to_hbm [thread:$0]  %s448, 128, %s445, %s416
        $region40: #{tpu_custom_call.1} parent=31 // pred_fallthru
          _
        // Predicated region
        $region41: #{tpu_custom_call.1} parent=31 // pred_check
          %p451 = pneg %p166
        $region42: #{tpu_custom_call.1} parent=31 // pred_check_branch
          %453 = sbr.rel (%p451) target = $region44
        $region43: #{tpu_custom_call.1} parent=31 // pred_region
          _
        $region44: #{tpu_custom_call.1} parent=31 // pred_fallthru
          _
      $region32: #{tpu_custom_call.1} parent=5 // pred_fallthru
        _
      %p454 = scmp.le.s32.totalorder 2, %s18
      // Predicated region
      $region45: #{tpu_custom_call.1} parent=5 // pred_check
        %p455 = pneg %p454
      $region46: #{tpu_custom_call.1} parent=5 // pred_check_branch
        %457 = sbr.rel (%p455) target = $region48
      $region47: #{tpu_custom_call.1} parent=5 // pred_region
        %s458 = ssub.s32 %s18, 2
        // Predicated region
        $region49: #{tpu_custom_call.1} parent=47 // pred_check
          %p459 = pneg %p120
        $region50: #{tpu_custom_call.1} parent=47 // pred_check_branch
          %461 = sbr.rel (%p459) target = $region52
        $region51: #{tpu_custom_call.1} parent=47 // pred_region
          %s462 = sand.u32 %s105, 1
          %s463 = scalar_lea.sflag [#allocation3], %s462
          %s464 = sand.u32 %s105, 1
          %s465 = smul.addr %s464, 16
          %s466 = scalar_lea.vmem [#allocation2], %s465
          %467 = dma.done %s463, 256
        $region52: #{tpu_custom_call.1} parent=47 // pred_fallthru
          _
        // Predicated region
        $region53: #{tpu_custom_call.1} parent=47 // pred_check
          %p468 = pneg %p146
        $region54: #{tpu_custom_call.1} parent=47 // pred_check_branch
          %470 = sbr.rel (%p468) target = $region56
        $region55: #{tpu_custom_call.1} parent=47 // pred_region
          %s471 = sand.u32 %s131, 1
          %s472 = scalar_lea.sflag [#allocation5], %s471
          %s473 = sand.u32 %s131, 1
          %s474 = smul.addr %s473, 8
          %s475 = scalar_lea.vmem [#allocation4], %s474
          %476 = dma.done %s472, 128
        $region56: #{tpu_custom_call.1} parent=47 // pred_fallthru
          _
        // Predicated region
        $region57: #{tpu_custom_call.1} parent=47 // pred_check
          %p477 = pneg %p172
        $region58: #{tpu_custom_call.1} parent=47 // pred_check_branch
          %479 = sbr.rel (%p477) target = $region60
        $region59: #{tpu_custom_call.1} parent=47 // pred_region
          %p480 = scmp.lt.s32.totalorder %s24, 1
          %s481 = scalar_select %p480, %s24, 1
          %s482 = smul.addr %s481, 8
          %s483 = scalar_lea.vmem %s5, %s482
        $region60: #{tpu_custom_call.1} parent=47 // pred_fallthru
          _
      $region48: #{tpu_custom_call.1} parent=5 // pred_fallthru
        _
    $region6: #{tpu_custom_call.1} parent=1 // loop_footer
      %s22 = sadd.s32 1, %s18
    $region7: #{tpu_custom_call.1} parent=1 // loop_footer_branch
      %17 = sbr.rel target = $region3
    $region8: #{tpu_custom_call.1} parent=1 // loop_exit
      _
    %484 = vsyncpa [#allocation3], 1
    %s485 = scalar_lea.sflag [#allocation3], 1
    %486 = vsyncpa %s485, 1
    %487 = vsyncpa [#allocation5], 1
    %s488 = scalar_lea.sflag [#allocation5], 1
    %489 = vsyncpa %s488, 1

</llo_original>
